<compile_context>
chip_gen: v5e
topology: v5e:2x2
jax: 0.10.0
libtpu: 0.0.40
codegen_flags: <defaults>
</compile_context>

<pallas_src>
import functools

import jax
import jax.numpy as jnp
from jax.experimental import pallas as pl
from jax.experimental.pallas import tpu as pltpu


def _round_up(x, m):
    return ((x + m - 1) // m) * m


# --------------------------- Pallas kernel bodies -------------------------- #
def _linear_resident_kernel(x_ref, w_ref, b_ref, o_ref):
    """Weight-resident path: W/bias are full constant blocks, grid over M only.

    No K loop, no accumulator scratch, no init/finalize phases.  x arrives f32
    and is cast to bf16 in VMEM right before the MXU (no extra HBM cast pass).
    """
    acc = jnp.dot(
        x_ref[...].astype(jnp.bfloat16),
        w_ref[...],
        preferred_element_type=jnp.float32,
    )
    o_ref[...] = (acc + b_ref[...]).astype(o_ref.dtype)


def _linear_tiled_kernel(x_ref, w_ref, b_ref, o_ref):
    """Tiled reduction path: grid=(M/tm, N/tn, K/tk), K last.

    The output block index ignores k, so the f32 output tile stays
    VMEM-resident across the reduction: accumulate straight into o_ref
    (no scratch) and seed it with the bias at k==0 (no epilogue add).
    """
    @pl.when(pl.program_id(2) == 0)
    def _init():
        o_ref[...] = jnp.broadcast_to(b_ref[...], o_ref.shape).astype(o_ref.dtype)

    o_ref[...] += jnp.dot(
        x_ref[...].astype(jnp.bfloat16),
        w_ref[...],
        preferred_element_type=jnp.float32,
    )


# ------------------------------ pallas_call wrappers ----------------------- #
@jax.jit
def _pallas_linear_resident(x2d, w_t, bias2d):
    """x2d: (M, K) f32, w_t: (K, N) bf16 (pre-transposed), bias2d: (1, N) f32.

    Full-array blocks for W/bias mean K and N need no 128 alignment at all.
    Ragged M is handled by pl.cdiv + masked partial stores (no pad / slice).
    """
    M, K = x2d.shape
    N = w_t.shape[1]

    tm = max(16, min(512, _round_up(M, 16)))
    grid = (pl.cdiv(M, tm),)

    cost = pl.CostEstimate(
        flops=2 * M * N * K,
        transcendentals=0,
        bytes_accessed=M * K * 4 + K * N * 2 + N * 4 + M * N * 4,
    )

    return pl.pallas_call(
        _linear_resident_kernel,
        out_shape=jax.ShapeDtypeStruct((M, N), jnp.float32),
        grid_spec=pltpu.PrefetchScalarGridSpec(
            num_scalar_prefetch=0,
            grid=grid,
            in_specs=[
                pl.BlockSpec((tm, K), lambda i: (i, 0)),   # x row-tile (f32)
                pl.BlockSpec((K, N), lambda i: (0, 0)),    # W^T, fully resident
                pl.BlockSpec((1, N), lambda i: (0, 0)),    # bias, fully resident
            ],
            out_specs=pl.BlockSpec((tm, N), lambda i: (i, 0)),
        ),
        compiler_params=pltpu.CompilerParams(
            dimension_semantics=("parallel",),
        ),
        cost_estimate=cost,
    )(x2d, w_t, bias2d)


@jax.jit
def _pallas_linear_tiled(x2d, w_t_kpad, bias2d):
    """x2d: (M, K) f32; w_t_kpad: (Kp, N) bf16 with K zero-padded to a multiple
    of 128 ONCE at __init__; bias2d: (1, N) f32.  Returns (M, N) f32."""
    M, K = x2d.shape
    Kp, N = w_t_kpad.shape

    # Ragged-K fallback only (in_features not a multiple of 128): activations
    # must match the once-padded weight's K.  No-op for aligned models.
    if K != Kp:
        x2d = jnp.pad(x2d, ((0, 0), (0, Kp - K)))

    # Big lane-dense tiles (review: 256x512x512 where shapes allow).  Double
    # buffered footprint ~3 MiB -> fits v5e 16 MiB scoped default and v7x
    # 32 MiB scoped / 64 MiB physical VMEM without overrides.
    tm = max(16, min(256, _round_up(M, 16)))
    tk = 512 if Kp % 512 == 0 else (256 if Kp % 256 == 0 else 128)
    tn = 512 if N % 512 == 0 else (256 if N % 256 == 0 else 128)

    grid = (pl.cdiv(M, tm), pl.cdiv(N, tn), Kp // tk)

    cost = pl.CostEstimate(
        flops=2 * M * N * Kp,
        transcendentals=0,
        bytes_accessed=(M * Kp * 4) * grid[1]      # x re-read per N block
        + (Kp * N * 2) * grid[0]                   # W re-read per M block
        + M * N * 4 + N * 4,
    )

    # TODO(synk): if profiling shows exposed DMA on the K loop at large K,
    # add pipeline_mode=pl.Buffered(3) to the x/W specs (re-budget VMEM on v7x).
    return pl.pallas_call(
        _linear_tiled_kernel,
        out_shape=jax.ShapeDtypeStruct((M, N), jnp.float32),
        grid_spec=pltpu.PrefetchScalarGridSpec(
            num_scalar_prefetch=0,
            grid=grid,
            in_specs=[
                pl.BlockSpec((tm, tk), lambda i, j, k: (i, k)),   # x tile (f32)
                pl.BlockSpec((tk, tn), lambda i, j, k: (k, j)),   # W^T tile (bf16)
                pl.BlockSpec((1, tn), lambda i, j, k: (0, j)),    # bias tile
            ],
            out_specs=pl.BlockSpec((tm, tn), lambda i, j, k: (i, j)),
        ),
        compiler_params=pltpu.CompilerParams(
            dimension_semantics=("parallel", "parallel", "arbitrary"),
        ),
        cost_estimate=cost,
    )(x2d, w_t_kpad, bias2d)


# --------------------------- Wrapped module (Linear) ----------------------- #
class PallasLinear:
    """nn.Linear equivalent: y = x @ W^T + b, weight stored as (out, in)."""

    # Conservative budget for the weight-resident path (everything counted
    # double-buffered); well inside every generation's scoped VMEM default.
    _RESIDENT_VMEM_BUDGET = 8 * 1024 * 1024

    def __init__(self, in_features, out_features, key, force_path=None):
        kw, kb = jax.random.split(key)
        bound = 1.0 / float(in_features) ** 0.5
        # PyTorch-style (out, in) weight, exposed via TimeWrapper.weight.
        self.weight = jax.random.uniform(
            kw, (out_features, in_features), jnp.float32, -bound, bound
        )
        self.bias = jax.random.uniform(
            kb, (out_features,), jnp.float32, -bound, bound
        )
        self.force_path = force_path  # None | "resident" | "tiled"
        self._derive_kernel_operands()

    def _derive_kernel_operands(self):
        """(Re)build kernel-side weight/bias copies.  Call again if .weight or
        .bias are mutated (e.g. after a training step) -- otherwise the kernel
        would silently use a stale copy."""
        in_features = self.weight.shape[1]
        # Pre-transposed bf16 weight, computed ONCE (no per-call transpose or
        # cast HBM round trip).
        # TODO(synk): on v7x, fp8 (e4m3) weight storage would halve weight-side
        # HBM traffic for memory-bound decode-like shapes (not numerically
        # drop-in, so left as bf16 here).
        self.w_t_bf16 = self.weight.T.astype(jnp.bfloat16)           # (K, N)
        kp = _round_up(in_features, 128)
        if kp != in_features:
            self.w_t_bf16_kpad = jnp.pad(
                self.w_t_bf16, ((0, kp - in_features), (0, 0))
            )
        else:
            self.w_t_bf16_kpad = self.w_t_bf16
        self.bias2d = self.bias.astype(jnp.float32).reshape(1, -1)   # (1, N)

    def __call__(self, x):
        lead = x.shape[:-1]
        K = x.shape[-1]
        N = self.weight.shape[0]
        x2d = x.reshape(-1, K)   # no dtype cast here: bf16 cast happens in-kernel
        M = x2d.shape[0]

        # Path selection (static shapes, plain Python): keep W fully
        # VMEM-resident whenever it fits the budget; otherwise use the big
        # tiled reduction kernel.
        tm_small = max(16, min(512, _round_up(M, 16)))
        resident_bytes = (
            2 * (K * N * 2 + tm_small * K * 4 + tm_small * N * 4) + 2 * N * 4
        )
        use_resident = resident_bytes <= self._RESIDENT_VMEM_BUDGET
        if self.force_path == "resident":
            use_resident = True
        elif self.force_path == "tiled":
            use_resident = False

        if use_resident:
            y2d = _pallas_linear_resident(x2d, self.w_t_bf16, self.bias2d)
        else:
            y2d = _pallas_linear_tiled(x2d, self.w_t_bf16_kpad, self.bias2d)
        return y2d.reshape(*lead, N).astype(x.dtype)


# ------------------------------- TimeWrapper ------------------------------- #
class TimeWrapper:
    """Faithful port of the PyTorch TimeWrapper: call-through + shape print."""

    def __init__(self, wrapped_module, tag):
        self.wrapped_module = wrapped_module
        self.tag = tag

    def __call__(self, *args):
        ret = self.wrapped_module(*args)
        if isinstance(ret, jax.Array):
            print(f"ModuleType: {self.tag}, shape:", ret.shape, "count:", ret.size)
        else:
            print(
                f"ModuleType: {self.tag}, shape:",
                [r.shape for r in ret],
                "count:",
                sum(r.size for r in ret),
            )
        return ret

    @property
    def weight(self):
        return getattr(self.wrapped_module, "weight", None)


# ---------------------------------- main ----------------------------------- #
if __name__ == "__main__":
    key = jax.random.PRNGKey(0)
    k_x, k_m1, k_x2, k_m2 = jax.random.split(key, 4)

    # --- Small lane-dense example: takes the weight-resident single-pass path.
    batch, seq, hidden = 2, 8, 128
    x = jax.random.normal(k_x, (batch, seq, hidden), dtype=jnp.float32)

    wrapped = PallasLinear(hidden, hidden, k_m1)
    timed = TimeWrapper(wrapped, tag="Linear")
    y = timed(x)
    jax.block_until_ready(y)

    # Tight check vs. a reference using the same bf16-quantized operands
    # (kernel multiplies bf16 operands with f32 accumulation).
    x_q = x.astype(jnp.bfloat16).astype(jnp.float32)
    w_q = wrapped.weight.T.astype(jnp.bfloat16).astype(jnp.float32)
    y_ref_q = (x_q.reshape(-1, hidden) @ w_q + wrapped.bias).reshape(batch, seq, hidden)
    # Loose sanity check vs. the full-precision f32 reference.
    y_ref_f32 = x @ wrapped.weight.T + wrapped.bias

    assert y.shape == (batch, seq, hidden)
    assert jnp.allclose(y, y_ref_q, atol=1e-3, rtol=1e-3)
    assert jnp.allclose(y, y_ref_f32, atol=5e-2, rtol=5e-2)
    assert timed.weight is wrapped.weight

    # --- Ragged-shape example forced down the tiled reduction path:
    #     K=300 (not 128-aligned -> once-padded weight + K-edge zero-fill),
    #     N=250 (exercises masked partial output stores), grid_k > 1.
    in2, out2 = 300, 250
    x2 = jax.random.normal(k_x2, (batch, seq, in2), dtype=jnp.float32)
    wrapped2 = PallasLinear(in2, out2, k_m2, force_path="tiled")
    timed2 = TimeWrapper(wrapped2, tag="LinearTiled")
    y2 = timed2(x2)
    jax.block_until_ready(y2)

    x2_q = x2.astype(jnp.bfloat16).astype(jnp.float32)
    w2_q = wrapped2.weight.T.astype(jnp.bfloat16).astype(jnp.float32)
    y2_ref_q = (x2_q.reshape(-1, in2) @ w2_q + wrapped2.bias).reshape(batch, seq, out2)

    assert y2.shape == (batch, seq, out2)
    assert jnp.allclose(y2, y2_ref_q, atol=1e-3, rtol=1e-3)
    assert timed2.weight is wrapped2.weight

    print("KERNEL_OK")
</pallas_src>

<mosaic_0001>
module attributes {stable_mosaic.version = 11 : i64} {
  func.func @_linear_resident_kernel(%arg0: i32, %arg1: memref<16x128xf32, #tpu.memory_space<vmem>>, %arg2: memref<128x128xbf16, #tpu.memory_space<vmem>>, %arg3: memref<1x128xf32, #tpu.memory_space<vmem>>, %arg4: memref<16x128xf32, #tpu.memory_space<vmem>>) attributes {dimension_semantics = [#tpu.dimension_semantics<parallel>], iteration_bounds = array<i64: 1>, scalar_prefetch = 0 : i64, scratch_operands = 0 : i64, tpu.core_type = #tpu.core_type<tc>, window_params = [{transform_indices = @transform_0, window_bounds = array<i64: 16, 128>}, {pipeline_mode = #tpu.pipeline_mode<synchronous>, transform_indices = @transform_1, window_bounds = array<i64: 128, 128>}, {pipeline_mode = #tpu.pipeline_mode<synchronous>, transform_indices = @transform_2, window_bounds = array<i64: 1, 128>}, {transform_indices = @transform_3, window_bounds = array<i64: 16, 128>}]} {
    %c0 = arith.constant 0 : index
    %c0_0 = arith.constant 0 : index
    %0 = vector.load %arg1[%c0, %c0_0] : memref<16x128xf32, #tpu.memory_space<vmem>>, vector<16x128xf32>
    %1 = arith.truncf %0 : vector<16x128xf32> to vector<16x128xbf16>
    %c0_1 = arith.constant 0 : index
    %c0_2 = arith.constant 0 : index
    %2 = vector.load %arg2[%c0_1, %c0_2] : memref<128x128xbf16, #tpu.memory_space<vmem>>, vector<128x128xbf16>
    %cst = arith.constant dense<0.000000e+00> : vector<16x128xf32>
    %3 = tpu.matmul %1, %2, %cst {dimension_numbers = #tpu.dot_dimension_numbers<[1], [0], [0], [1], [0, 0, 1, 1], [], []>} : vector<16x128xbf16>, vector<128x128xbf16>, vector<16x128xf32> -> vector<16x128xf32>
    %c0_3 = arith.constant 0 : index
    %c0_4 = arith.constant 0 : index
    %4 = vector.load %arg3[%c0_3, %c0_4] : memref<1x128xf32, #tpu.memory_space<vmem>>, vector<1x128xf32>
    %5 = vector.broadcast %4 : vector<1x128xf32> to vector<16x128xf32>
    %6 = arith.addf %3, %5 : vector<16x128xf32>
    %c0_5 = arith.constant 0 : index
    %c0_6 = arith.constant 0 : index
    %7 = vector.load %arg4[%c0_5, %c0_6] : memref<16x128xf32, #tpu.memory_space<vmem>>, vector<16x128xf32>
    tpu.vector_store %arg4[%c0_5, %c0_6], %6 {strides = array<i32>} : memref<16x128xf32, #tpu.memory_space<vmem>>, vector<16x128xf32>,
    return
  }
  func.func @transform_0(%arg0: i32) -> (i32, i32) {
    %c0_i32 = arith.constant 0 : i32
    %c0_i32_0 = arith.constant 0 : i32
    return %arg0, %c0_i32 : i32, i32
  }
  func.func @transform_1(%arg0: i32) -> (i32, i32) {
    %c0_i32 = arith.constant 0 : i32
    %c0_i32_0 = arith.constant 0 : i32
    %c0_i32_1 = arith.constant 0 : i32
    return %c0_i32, %c0_i32_0 : i32, i32
  }
  func.func @transform_2(%arg0: i32) -> (i32, i32) {
    %c0_i32 = arith.constant 0 : i32
    %c0_i32_0 = arith.constant 0 : i32
    %c0_i32_1 = arith.constant 0 : i32
    return %c0_i32, %c0_i32_0 : i32, i32
  }
  func.func @transform_3(%arg0: i32) -> (i32, i32) {
    %c0_i32 = arith.constant 0 : i32
    %c0_i32_0 = arith.constant 0 : i32
    return %arg0, %c0_i32 : i32, i32
  }
}

</mosaic_0001>

<llo_original>
// kernel: _pallas_linear_resident.1
$region0: #{_pallas_linear_resident.1}
  #allocation0 [shape = 'u32[]', space=smem, size = 0x4, offset = 0x4, fixed_abs, tag = 'smem constant byte address 0x4 - core index']
  #allocation1 [shape = 'u32[72,128]{1,0:T(1,128)}', space=vmem, size = 0x9000, scoped, tag = 'internal scratch']
  %s0 = inlined_call_operand.hbm [shape: f32[16,128], index: 0, kind: input, shape index: {}]
  %s1 = inlined_call_operand.hbm [shape: bf16[128,128], index: 1, kind: input, shape index: {}]
  %s2 = inlined_call_operand.vmem [shape: f32[1,128], index: 2, kind: input, shape index: {}]
  %s3 = inlined_call_operand.hbm [shape: f32[16,128], index: 3, kind: output, shape index: {}]
  %s4 = sld [smem:[#allocation0]]
  $region30: #{_pallas_linear_resident.1} parent=0
    _
  %s6 = ssub.s32 1, %s4
  %s7 = scalar_select 0, %s6, %s4
  $region1: #{_pallas_linear_resident.1} parent=0
    #allocation2 [shape = 'u8[8192]{0}', space=vmem, size = 0x2000, scoped, tag = 'input window, operand 0, single buffered']
    #allocation3 [shape = 's32[1]{0}', space=sflag, size = 0x4, scoped, tag = 'scoped memory for _pallas_linear_resident.1']
    #allocation4 [shape = 's32[1]{0}', space=sflag, size = 0x4, scoped, tag = 'scoped memory for _pallas_linear_resident.1']
    #allocation5 [shape = 'u8[32768]{0}', space=vmem, size = 0x8000, scoped, tag = 'input window, operand 1, single buffered']
    #allocation6 [shape = 's32[1]{0}', space=sflag, size = 0x4, scoped, tag = 'scoped memory for _pallas_linear_resident.1']
    #allocation7 [shape = 'u8[8192]{0}', space=vmem, size = 0x2000, scoped, tag = 'output window, operand 0, single buffered']
    %8 = vsyncpa [#allocation3], 0
    %9 = vsyncpa [#allocation6], 0
    %10 = vsyncpa [#allocation4], 0
    // Predicated region
    $region2: #{_pallas_linear_resident.1} parent=1 // pred_check
      _
    $region3: #{_pallas_linear_resident.1} parent=1 // pred_check_branch
      %12 = sbr.rel (0) target = $region5
    $region4: #{_pallas_linear_resident.1} parent=1 // pred_region
      %14 = vsyncadd [#allocation3], 0
      %s15 = sshll.u32 %s0, 4
      %s16 = int_to_ptr.hbm [resolvable:$true] %s15
      %s17 = sshll.u32 [#allocation2], 4
      %s18 = int_to_ptr.vmem [resolvable:$true] %s17
      %23 = dma.hbm_to_vmem [thread:$0]  %s16, 256, %s18, [#allocation3], 128, 128, 8
    $region5: #{_pallas_linear_resident.1} parent=1 // pred_fallthru
      _
    // Predicated region
    $region6: #{_pallas_linear_resident.1} parent=1 // pred_check
      _
    $region7: #{_pallas_linear_resident.1} parent=1 // pred_check_branch
      %25 = sbr.rel (0) target = $region9
    $region8: #{_pallas_linear_resident.1} parent=1 // pred_region
      %27 = vsyncadd [#allocation6], 0
      %s28 = sshll.u32 %s1, 4
      %s29 = int_to_ptr.hbm [resolvable:$true] %s28
      %s30 = sshll.u32 [#allocation5], 4
      %s31 = int_to_ptr.vmem [resolvable:$true] %s30
      %36 = dma.hbm_to_vmem [thread:$0]  %s29, 1024, %s31, [#allocation6], 64, 64, 4
    $region9: #{_pallas_linear_resident.1} parent=1 // pred_fallthru
      _
    // Predicated region
    $region10: #{_pallas_linear_resident.1} parent=1 // pred_check
      _
    $region11: #{_pallas_linear_resident.1} parent=1 // pred_check_branch
      %38 = sbr.rel (0) target = $region13
    $region12: #{_pallas_linear_resident.1} parent=1 // pred_region
      _
    $region13: #{_pallas_linear_resident.1} parent=1 // pred_fallthru
      _
    // Predicated region
    $region14: #{_pallas_linear_resident.1} parent=1 // pred_check
      _
    $region15: #{_pallas_linear_resident.1} parent=1 // pred_check_branch
      %40 = sbr.rel (0) target = $region17
    $region16: #{_pallas_linear_resident.1} parent=1 // pred_region
      %42 = dma.done [#allocation3], 256
    $region17: #{_pallas_linear_resident.1} parent=1 // pred_fallthru
      _
    // Predicated region
    $region18: #{_pallas_linear_resident.1} parent=1 // pred_check
      _
    $region19: #{_pallas_linear_resident.1} parent=1 // pred_check_branch
      %44 = sbr.rel (0) target = $region21
    $region20: #{_pallas_linear_resident.1} parent=1 // pred_region
      %46 = dma.done [#allocation6], 1024
    $region21: #{_pallas_linear_resident.1} parent=1 // pred_fallthru
      _
    %v47 = vld [vmem:[#allocation2] sm:$0xff]
    %v48 = vld [vmem:[#allocation2 + $0x8] sm:$0xff]
    %v49 = vpack.c.bf16 %v48, %v47
    %v50 = vld [vmem:[#allocation5] sm:$0xf]
    %v51 = vld [vmem:[#allocation5 + $0x4] sm:$0xf]
    %v52 = vld [vmem:[#allocation5 + $0x8] sm:$0xf]
    %v53 = vld [vmem:[#allocation5 + $0xc] sm:$0xf]
    %v54 = vld [vmem:[#allocation5 + $0x10] sm:$0xf]
    %v55 = vld [vmem:[#allocation5 + $0x14] sm:$0xf]
    %v56 = vld [vmem:[#allocation5 + $0x18] sm:$0xf]
    %v57 = vld [vmem:[#allocation5 + $0x1c] sm:$0xf]
    %v58 = vld [vmem:[#allocation5 + $0x20] sm:$0xf]
    %v59 = vld [vmem:[#allocation5 + $0x24] sm:$0xf]
    %v60 = vld [vmem:[#allocation5 + $0x28] sm:$0xf]
    %v61 = vld [vmem:[#allocation5 + $0x2c] sm:$0xf]
    %v62 = vld [vmem:[#allocation5 + $0x30] sm:$0xf]
    %v63 = vld [vmem:[#allocation5 + $0x34] sm:$0xf]
    %v64 = vld [vmem:[#allocation5 + $0x38] sm:$0xf]
    %v65 = vld [vmem:[#allocation5 + $0x3c] sm:$0xf]
    %v66 = vld [vmem:[%s2] sm:$0x1]
    %v68 = vperm.slane %v66, 0
    %v86 = vunpack.c.l.b16 %v50
    %v87 = vunpack.c.l.b16 %v51
    %v88 = vunpack.c.l.b16 %v52
    %v89 = vunpack.c.l.b16 %v53
    %v90 = vunpack.c.l.b16 %v54
    %v91 = vunpack.c.l.b16 %v55
    %v92 = vunpack.c.l.b16 %v56
    %v93 = vunpack.c.l.b16 %v57
    %v94 = vunpack.c.l.b16 %v58
    %v95 = vunpack.c.l.b16 %v59
    %v96 = vunpack.c.l.b16 %v60
    %v97 = vunpack.c.l.b16 %v61
    %v98 = vunpack.c.l.b16 %v62
    %v99 = vunpack.c.l.b16 %v63
    %v100 = vunpack.c.l.b16 %v64
    %v101 = vunpack.c.l.b16 %v65
    %v102 = vpack.c.b16 %v87, %v86
    %v103 = vpack.c.b16 %v89, %v88
    %v104 = vpack.c.b16 %v91, %v90
    %v105 = vpack.c.b16 %v93, %v92
    %v106 = vpack.c.b16 %v95, %v94
    %v107 = vpack.c.b16 %v97, %v96
    %v108 = vpack.c.b16 %v99, %v98
    %v109 = vpack.c.b16 %v101, %v100
    %118 = vmatpush.bf16.msra.mxu0 %v109
    %119 = vmatpush.bf16.msra.mxu0 %v108
    %120 = vmatpush.bf16.msra.mxu0 %v107
    %121 = vmatpush.bf16.msra.mxu0 %v106
    %122 = vmatpush.bf16.msra.mxu0 %v105
    %123 = vmatpush.bf16.msra.mxu0 %v104
    %124 = vmatpush.bf16.msra.mxu0 %v103
    %125 = vmatpush.bf16.msra.mxu0 %v102
    %126 = vmatmul.bf16.gmra.mxu0 %v49
    %v127 = vpop.f32.mrf.mxu0
    %v128 = vadd.f32 %v68, %v127
    %v129 = vpop.f32.mrf.mxu0
    %v130 = vadd.f32 %v68, %v129
    %131 = vdwg.mxu0
    %132 = vst [vmem:[#allocation7] sm:$0xff] %v128
    %133 = vst [vmem:[#allocation7 + $0x8] sm:$0xff] %v130
    // Predicated region
    $region22: #{_pallas_linear_resident.1} parent=1 // pred_check
      _
    $region23: #{_pallas_linear_resident.1} parent=1 // pred_check_branch
      %135 = sbr.rel (0) target = $region25
    $region24: #{_pallas_linear_resident.1} parent=1 // pred_region
      %137 = vsyncadd [#allocation4], 0
      %s138 = sshll.u32 [#allocation7], 4
      %s139 = int_to_ptr.vmem [resolvable:$true] %s138
      %s140 = sshll.u32 %s3, 4
      %s141 = int_to_ptr.hbm [resolvable:$true] %s140
      %146 = dma.vmem_to_hbm [thread:$0]  %s139, 256, %s141, [#allocation4], 128, 128, 8
    $region25: #{_pallas_linear_resident.1} parent=1 // pred_fallthru
      _
    // Predicated region
    $region26: #{_pallas_linear_resident.1} parent=1 // pred_check
      _
    $region27: #{_pallas_linear_resident.1} parent=1 // pred_check_branch
      %148 = sbr.rel (0) target = $region29
    $region28: #{_pallas_linear_resident.1} parent=1 // pred_region
      %150 = dma.done [#allocation4], 256
    $region29: #{_pallas_linear_resident.1} parent=1 // pred_fallthru
      _
    %151 = vsyncpa [#allocation3], 1
    %152 = vsyncpa [#allocation6], 1
    %153 = vsyncpa [#allocation4], 1

</llo_original>
